<compile_context>
chip_gen: v7x
topology: tpu7x:2x2x1
jax: 0.10.0
libtpu: 0.0.40
codegen_flags: <defaults>
</compile_context>

<pallas_src>
import jax
import jax.numpy as jnp
from jax.experimental import pallas as pl
from jax.experimental.pallas import tpu as pltpu


# ----------------------------------------------------------------------------
# Parameter packing: one flat [rows, W] f32 buffer, static row offsets.
# ----------------------------------------------------------------------------
def pack_params(params, in_channels, num_features, width):
    W = width
    f3 = num_features[-1]

    def pad_block(a, rows):
        blk = jnp.zeros((rows, W), jnp.float32)
        return blk.at[: a.shape[0], : a.shape[1]].set(a)

    rows = []
    dims_in = [in_channels] + list(num_features[:-1])
    for i, ci in enumerate(dims_in, start=1):
        wn = params[f"w{i}n"]                       # lin_rel weight^T  [ci, fi]
        wr = params[f"w{i}r"]                       # lin_root weight^T [ci, fi]
        wcat = jnp.zeros((2 * W, W), jnp.float32)
        wcat = wcat.at[:ci, : wn.shape[1]].set(wn)
        wcat = wcat.at[W : W + ci, : wr.shape[1]].set(wr)
        rows += [wcat, pad_block(params[f"b{i}"], 1)]
    # Conv1d(1, 4, k=1)  ==  affine map into 4 channels
    rows += [pad_block(params["wm"], 1), pad_block(params["bm"], 1)]
    # fc over cat([max | mean | meta]) folded into one [3W, W] block
    wfc = jnp.zeros((3 * W, W), jnp.float32)
    wfc = wfc.at[:f3, :f3].set(params["wfa"])
    wfc = wfc.at[W : W + f3, :f3].set(params["wfb"])
    wfc = wfc.at[2 * W : 2 * W + 4, :f3].set(params["wfm"])
    rows += [wfc, pad_block(params["bf"], 1)]
    # fc2 padded to [W, W] (only column 0 real) so the output stays 2-D/lane-dense
    rows += [pad_block(params["wf2"], W), pad_block(params["bf2"], 1)]
    return jnp.concatenate(rows, axis=0)


# ----------------------------------------------------------------------------
# Kernel + wrapper factory (static offsets baked in via closure)
# ----------------------------------------------------------------------------
def make_forward(in_channels, num_features):
    W = max([in_channels, 4] + list(num_features))   # common padded width
    conv_stride = 2 * W + 1
    off_meta = 4 * conv_stride
    off_fc = off_meta + 2
    off_fc2 = off_fc + 3 * W + 1
    n_rows = off_fc2 + W + 1

    def kernel(x_ref, adj_ref, pool_ref, meta_ref, w_ref, out_ref):
        adj = adj_ref[...].astype(jnp.bfloat16)      # 0/1 -> exact in bf16
        P = pool_ref[...]                            # [B, N] f32
        h = x_ref[...]                               # [N, W] f32 (zero-padded)

        def gconv(h, off):
            w = w_ref[off : off + 2 * W, :].astype(jnp.bfloat16)   # [2W, W]
            b = w_ref[off + 2 * W : off + 2 * W + 1, :]            # [1, W]
            aggr = jnp.dot(adj, h.astype(jnp.bfloat16),
                           preferred_element_type=jnp.float32)     # [N, W]
            cat = jnp.concatenate([aggr, h], axis=-1).astype(jnp.bfloat16)
            out = jnp.dot(cat, w, preferred_element_type=jnp.float32) + b
            return jnp.maximum(out, 0.0)             # ReLU

        for i in range(4):
            h = gconv(h, i * conv_stride)            # [N, W]

        # ---- global mean pool (matmul with one-hot membership) ----
        counts = jnp.sum(P, axis=1, keepdims=True)                 # [B, 1]
        inv_counts = pl.reciprocal(jnp.maximum(counts, 1.0), approx=True)
        x_mean = jnp.dot(P, h, preferred_element_type=jnp.float32) * inv_counts

        # ---- global max pool (vectorized masked max over nodes) ----
        mask = P[:, :, None] > 0.5                                  # [B, N, 1]
        x_max = jnp.max(jnp.where(mask, h[None, :, :], -1e30), axis=1)  # [B, W]

        # ---- metadata branch: Conv1d(1,4,1) == broadcast affine (VPU) ----
        wm = w_ref[off_meta : off_meta + 1, :]                      # [1, W]
        bm = w_ref[off_meta + 1 : off_meta + 2, :]
        m_feat = jnp.maximum(meta_ref[...] * wm + bm, 0.0)          # [B, W]

        # ---- fc over cat([max, mean, meta]) folded into one matmul ----
        wfc = w_ref[off_fc : off_fc + 3 * W, :]                     # [3W, W]
        bf = w_ref[off_fc + 3 * W : off_fc + 3 * W + 1, :]
        feats = jnp.concatenate([x_max, x_mean, m_feat], axis=-1)   # [B, 3W]
        hfc = jnp.maximum(
            jnp.dot(feats, wfc, preferred_element_type=jnp.float32) + bf, 0.0)

        # ---- fc2 (padded to width W; only column 0 is real) ----
        wf2 = w_ref[off_fc2 : off_fc2 + W, :]                       # [W, W]
        bf2 = w_ref[off_fc2 + W : off_fc2 + W + 1, :]
        out_ref[...] = jnp.dot(hfc, wf2, preferred_element_type=jnp.float32) + bf2

    @jax.jit
    def forward(x, adj, pool, meta, packed):
        num_graphs = pool.shape[0]
        x_pad = jnp.pad(x, ((0, 0), (0, W - x.shape[1])))           # [N, W]
        vmem = pl.BlockSpec(memory_space=pltpu.MemorySpace.VMEM)
        out = pl.pallas_call(
            kernel,
            out_shape=jax.ShapeDtypeStruct((num_graphs, W), jnp.float32),
            in_specs=[vmem] * 5,
            out_specs=vmem,
        )(x_pad, adj, pool, meta, packed)
        return out[:, 0]                                            # .squeeze(1)

    return forward, W, n_rows


# ----------------------------------------------------------------------------
# Deterministic synthetic parameters matching the torch module's shapes
# ----------------------------------------------------------------------------
def init_params(key, in_channels, num_features):
    f0, f1, f2, f3 = num_features
    keys = jax.random.split(key, 32)
    k = iter(keys)

    def lin(kk, fan_in, fan_out):
        # torch Linear weight is [out, in]; store transposed [in, out]
        return 0.1 * jax.random.normal(kk, (fan_in, fan_out), jnp.float32)

    p = {}
    dims = [(in_channels, f0), (f0, f1), (f1, f2), (f2, f3)]
    for i, (fi, fo) in enumerate(dims, start=1):
        p[f"w{i}n"] = lin(next(k), fi, fo)                     # lin_rel weight^T
        p[f"w{i}r"] = lin(next(k), fi, fo)                     # lin_root weight^T
        p[f"b{i}"] = 0.1 * jax.random.normal(next(k), (1, fo), jnp.float32)
    # Conv1d(1, 4, kernel_size=1): weight [4,1,1] -> [1,4], bias [4] -> [1,4]
    p["wm"] = 0.1 * jax.random.normal(next(k), (1, 4), jnp.float32)
    p["bm"] = 0.1 * jax.random.normal(next(k), (1, 4), jnp.float32)
    # fc: Linear(2*f3 + 4, f3), weight^T split into [max | mean | meta] blocks
    wfc = lin(next(k), 2 * f3 + 4, f3)
    p["wfa"] = wfc[:f3, :]
    p["wfb"] = wfc[f3:2 * f3, :]
    p["wfm"] = wfc[2 * f3:, :]
    p["bf"] = 0.1 * jax.random.normal(next(k), (1, f3), jnp.float32)
    # fc2: Linear(f3, 1)
    p["wf2"] = lin(next(k), f3, 1)
    p["bf2"] = 0.1 * jax.random.normal(next(k), (1, 1), jnp.float32)
    return p


if __name__ == "__main__":
    key = jax.random.PRNGKey(0)
    k_x, k_m, k_p = jax.random.split(key, 3)

    in_channels = 4
    num_features = [8, 8, 8, 8]
    num_graphs = 2
    nodes_per_graph = 8
    num_nodes = num_graphs * nodes_per_graph   # 16

    # node features [N, 4]
    x = jax.random.normal(k_x, (num_nodes, in_channels), jnp.float32)

    # deterministic edge_index: undirected ring within each graph -> dense adjacency
    adj = jnp.zeros((num_nodes, num_nodes), jnp.float32)
    for g in range(num_graphs):
        base = g * nodes_per_graph
        for i in range(nodes_per_graph):
            src = base + i
            dst = base + (i + 1) % nodes_per_graph
            adj = adj.at[dst, src].set(1.0)   # edge src -> dst
            adj = adj.at[src, dst].set(1.0)   # edge dst -> src

    # batch vector -> one-hot pooling matrix [B, N]
    batch = jnp.repeat(jnp.arange(num_graphs), nodes_per_graph)
    pool = jax.nn.one_hot(batch, num_graphs, dtype=jnp.float32).T   # [B, N]

    # metadata [B, 1] (fc in_dim = 2*f3 + 4 implies 1 metadata scalar per graph)
    meta = jax.random.normal(k_m, (num_graphs, 1), jnp.float32)

    params = init_params(k_p, in_channels, num_features)
    forward, W, n_rows = make_forward(in_channels, num_features)
    packed = pack_params(params, in_channels, num_features, W)
    assert packed.shape == (n_rows, W)

    out = forward(x, adj, pool, meta, packed)
    out = jax.block_until_ready(out)

    assert out.shape == (num_graphs,)
    assert bool(jnp.all(jnp.isfinite(out)))
    print("KERNEL_OK")
</pallas_src>

<mosaic_0001>
module attributes {stable_mosaic.version = 11 : i64} {
  func.func @kernel(%arg0: memref<16x8xf32, #tpu.memory_space<vmem>>, %arg1: memref<16x16xf32, #tpu.memory_space<vmem>>, %arg2: memref<2x16xf32, #tpu.memory_space<vmem>>, %arg3: memref<2x1xf32, #tpu.memory_space<vmem>>, %arg4: memref<104x8xf32, #tpu.memory_space<vmem>>, %arg5: memref<2x8xf32, #tpu.memory_space<vmem>>) attributes {dimension_semantics = [], scalar_prefetch = 0 : i64, scratch_operands = 0 : i64, tpu.core_type = #tpu.core_type<tc>} {
    %c0 = arith.constant 0 : index
    %c0_0 = arith.constant 0 : index
    %0 = vector.load %arg1[%c0, %c0_0] : memref<16x16xf32, #tpu.memory_space<vmem>>, vector<16x16xf32>
    %1 = arith.truncf %0 : vector<16x16xf32> to vector<16x16xbf16>
    %c0_1 = arith.constant 0 : index
    %c0_2 = arith.constant 0 : index
    %2 = vector.load %arg2[%c0_1, %c0_2] : memref<2x16xf32, #tpu.memory_space<vmem>>, vector<2x16xf32>
    %c0_3 = arith.constant 0 : index
    %c0_4 = arith.constant 0 : index
    %3 = vector.load %arg0[%c0_3, %c0_4] : memref<16x8xf32, #tpu.memory_space<vmem>>, vector<16x8xf32>
    %c0_5 = arith.constant 0 : index
    %c0_6 = arith.constant 0 : index
    %4 = vector.load %arg4[%c0_5, %c0_6] : memref<104x8xf32, #tpu.memory_space<vmem>>, vector<16x8xf32>
    %5 = arith.truncf %4 : vector<16x8xf32> to vector<16x8xbf16>
    %c16 = arith.constant 16 : index
    %c0_7 = arith.constant 0 : index
    %6 = vector.load %arg4[%c16, %c0_7] : memref<104x8xf32, #tpu.memory_space<vmem>>, vector<1x8xf32>
    %7 = arith.truncf %3 : vector<16x8xf32> to vector<16x8xbf16>
    %cst = arith.constant dense<0.000000e+00> : vector<16x8xf32>
    %8 = tpu.matmul %1, %7, %cst {dimension_numbers = #tpu.dot_dimension_numbers<[1], [0], [0], [1], [0, 0, 1, 1], [], []>} : vector<16x16xbf16>, vector<16x8xbf16>, vector<16x8xf32> -> vector<16x8xf32>
    %9 = tpu.concatenate %8, %3 in 1 : vector<16x8xf32>, vector<16x8xf32> -> vector<16x16xf32>
    %10 = arith.truncf %9 : vector<16x16xf32> to vector<16x16xbf16>
    %cst_8 = arith.constant dense<0.000000e+00> : vector<16x8xf32>
    %11 = tpu.matmul %10, %5, %cst_8 {dimension_numbers = #tpu.dot_dimension_numbers<[1], [0], [0], [1], [0, 0, 1, 1], [], []>} : vector<16x16xbf16>, vector<16x8xbf16>, vector<16x8xf32> -> vector<16x8xf32>
    %12 = vector.broadcast %6 : vector<1x8xf32> to vector<16x8xf32>
    %13 = arith.addf %11, %12 : vector<16x8xf32>
    %cst_9 = arith.constant 0.000000e+00 : f32
    %14 = vector.broadcast %cst_9 : f32 to vector<16x8xf32>
    %15 = arith.maximumf %13, %14 : vector<16x8xf32>
    %c17 = arith.constant 17 : index
    %c0_10 = arith.constant 0 : index
    %16 = vector.load %arg4[%c17, %c0_10] : memref<104x8xf32, #tpu.memory_space<vmem>>, vector<16x8xf32>
    %17 = arith.truncf %16 : vector<16x8xf32> to vector<16x8xbf16>
    %c33 = arith.constant 33 : index
    %c0_11 = arith.constant 0 : index
    %18 = vector.load %arg4[%c33, %c0_11] : memref<104x8xf32, #tpu.memory_space<vmem>>, vector<1x8xf32>
    %19 = arith.truncf %15 : vector<16x8xf32> to vector<16x8xbf16>
    %cst_12 = arith.constant dense<0.000000e+00> : vector<16x8xf32>
    %20 = tpu.matmul %1, %19, %cst_12 {dimension_numbers = #tpu.dot_dimension_numbers<[1], [0], [0], [1], [0, 0, 1, 1], [], []>} : vector<16x16xbf16>, vector<16x8xbf16>, vector<16x8xf32> -> vector<16x8xf32>
    %21 = tpu.concatenate %20, %15 in 1 : vector<16x8xf32>, vector<16x8xf32> -> vector<16x16xf32>
    %22 = arith.truncf %21 : vector<16x16xf32> to vector<16x16xbf16>
    %cst_13 = arith.constant dense<0.000000e+00> : vector<16x8xf32>
    %23 = tpu.matmul %22, %17, %cst_13 {dimension_numbers = #tpu.dot_dimension_numbers<[1], [0], [0], [1], [0, 0, 1, 1], [], []>} : vector<16x16xbf16>, vector<16x8xbf16>, vector<16x8xf32> -> vector<16x8xf32>
    %24 = vector.broadcast %18 : vector<1x8xf32> to vector<16x8xf32>
    %25 = arith.addf %23, %24 : vector<16x8xf32>
    %cst_14 = arith.constant 0.000000e+00 : f32
    %26 = vector.broadcast %cst_14 : f32 to vector<16x8xf32>
    %27 = arith.maximumf %25, %26 : vector<16x8xf32>
    %c34 = arith.constant 34 : index
    %c0_15 = arith.constant 0 : index
    %28 = vector.load %arg4[%c34, %c0_15] : memref<104x8xf32, #tpu.memory_space<vmem>>, vector<16x8xf32>
    %29 = arith.truncf %28 : vector<16x8xf32> to vector<16x8xbf16>
    %c50 = arith.constant 50 : index
    %c0_16 = arith.constant 0 : index
    %30 = vector.load %arg4[%c50, %c0_16] : memref<104x8xf32, #tpu.memory_space<vmem>>, vector<1x8xf32>
    %31 = arith.truncf %27 : vector<16x8xf32> to vector<16x8xbf16>
    %cst_17 = arith.constant dense<0.000000e+00> : vector<16x8xf32>
    %32 = tpu.matmul %1, %31, %cst_17 {dimension_numbers = #tpu.dot_dimension_numbers<[1], [0], [0], [1], [0, 0, 1, 1], [], []>} : vector<16x16xbf16>, vector<16x8xbf16>, vector<16x8xf32> -> vector<16x8xf32>
    %33 = tpu.concatenate %32, %27 in 1 : vector<16x8xf32>, vector<16x8xf32> -> vector<16x16xf32>
    %34 = arith.truncf %33 : vector<16x16xf32> to vector<16x16xbf16>
    %cst_18 = arith.constant dense<0.000000e+00> : vector<16x8xf32>
    %35 = tpu.matmul %34, %29, %cst_18 {dimension_numbers = #tpu.dot_dimension_numbers<[1], [0], [0], [1], [0, 0, 1, 1], [], []>} : vector<16x16xbf16>, vector<16x8xbf16>, vector<16x8xf32> -> vector<16x8xf32>
    %36 = vector.broadcast %30 : vector<1x8xf32> to vector<16x8xf32>
    %37 = arith.addf %35, %36 : vector<16x8xf32>
    %cst_19 = arith.constant 0.000000e+00 : f32
    %38 = vector.broadcast %cst_19 : f32 to vector<16x8xf32>
    %39 = arith.maximumf %37, %38 : vector<16x8xf32>
    %c51 = arith.constant 51 : index
    %c0_20 = arith.constant 0 : index
    %40 = vector.load %arg4[%c51, %c0_20] : memref<104x8xf32, #tpu.memory_space<vmem>>, vector<16x8xf32>
    %41 = arith.truncf %40 : vector<16x8xf32> to vector<16x8xbf16>
    %c67 = arith.constant 67 : index
    %c0_21 = arith.constant 0 : index
    %42 = vector.load %arg4[%c67, %c0_21] : memref<104x8xf32, #tpu.memory_space<vmem>>, vector<1x8xf32>
    %43 = arith.truncf %39 : vector<16x8xf32> to vector<16x8xbf16>
    %cst_22 = arith.constant dense<0.000000e+00> : vector<16x8xf32>
    %44 = tpu.matmul %1, %43, %cst_22 {dimension_numbers = #tpu.dot_dimension_numbers<[1], [0], [0], [1], [0, 0, 1, 1], [], []>} : vector<16x16xbf16>, vector<16x8xbf16>, vector<16x8xf32> -> vector<16x8xf32>
    %45 = tpu.concatenate %44, %39 in 1 : vector<16x8xf32>, vector<16x8xf32> -> vector<16x16xf32>
    %46 = arith.truncf %45 : vector<16x16xf32> to vector<16x16xbf16>
    %cst_23 = arith.constant dense<0.000000e+00> : vector<16x8xf32>
    %47 = tpu.matmul %46, %41, %cst_23 {dimension_numbers = #tpu.dot_dimension_numbers<[1], [0], [0], [1], [0, 0, 1, 1], [], []>} : vector<16x16xbf16>, vector<16x8xbf16>, vector<16x8xf32> -> vector<16x8xf32>
    %48 = vector.broadcast %42 : vector<1x8xf32> to vector<16x8xf32>
    %49 = arith.addf %47, %48 : vector<16x8xf32>
    %cst_24 = arith.constant 0.000000e+00 : f32
    %50 = vector.broadcast %cst_24 : f32 to vector<16x8xf32>
    %51 = arith.maximumf %49, %50 : vector<16x8xf32>
    %cst_25 = arith.constant dense<0.000000e+00> : vector<2xf32>
    %52 = vector.multi_reduction <add>, %2, %cst_25 [1] : vector<2x16xf32> to vector<2xf32>
    %53 = vector.shape_cast %52 : vector<2xf32> to vector<2x1xf32>
    %cst_26 = arith.constant 1.000000e+00 : f32
    %54 = vector.broadcast %cst_26 : f32 to vector<2x1xf32>
    %55 = arith.maximumf %53, %54 : vector<2x1xf32>
    %56 = tpu.reciprocal %55 {approx = true} : vector<2x1xf32> -> vector<2x1xf32>
    %cst_27 = arith.constant dense<0.000000e+00> : vector<2x8xf32>
    %57 = tpu.matmul %2, %51, %cst_27 {dimension_numbers = #tpu.dot_dimension_numbers<[1], [0], [0], [1], [0, 0, 1, 1], [], []>} : vector<2x16xf32>, vector<16x8xf32>, vector<2x8xf32> -> vector<2x8xf32>
    %58 = vector.broadcast %56 : vector<2x1xf32> to vector<2x8xf32>
    %59 = arith.mulf %57, %58 : vector<2x8xf32>
    %60 = vector.shape_cast %2 : vector<2x16xf32> to vector<2x16x1xf32>
    %cst_28 = arith.constant 5.000000e-01 : f32
    %61 = vector.broadcast %cst_28 : f32 to vector<2x16x1xf32>
    %62 = arith.cmpf ogt, %60, %61 : vector<2x16x1xf32>
    %63 = vector.shape_cast %51 : vector<16x8xf32> to vector<1x16x8xf32>
    %cst_29 = arith.constant -1.000000e+30 : f32
    %64 = vector.shape_cast %62 : vector<2x16x1xi1> to vector<2x16x1xi1>
    %65 = vector.broadcast %64 : vector<2x16x1xi1> to vector<2x16x8xi1>
    %66 = vector.shape_cast %63 : vector<1x16x8xf32> to vector<1x16x8xf32>
    %67 = vector.broadcast %66 : vector<1x16x8xf32> to vector<2x16x8xf32>
    %68 = vector.broadcast %cst_29 : f32 to vector<2x16x8xf32>
    %69 = arith.select %65, %67, %68 : vector<2x16x8xi1>, vector<2x16x8xf32>
    %cst_30 = arith.constant dense<0xFF800000> : vector<2x8xf32>
    %70 = vector.multi_reduction <maximumf>, %69, %cst_30 [1] : vector<2x16x8xf32> to vector<2x8xf32>
    %c68 = arith.constant 68 : index
    %c0_31 = arith.constant 0 : index
    %71 = vector.load %arg4[%c68, %c0_31] : memref<104x8xf32, #tpu.memory_space<vmem>>, vector<1x8xf32>
    %c69 = arith.constant 69 : index
    %c0_32 = arith.constant 0 : index
    %72 = vector.load %arg4[%c69, %c0_32] : memref<104x8xf32, #tpu.memory_space<vmem>>, vector<1x8xf32>
    %c0_33 = arith.constant 0 : index
    %c0_34 = arith.constant 0 : index
    %73 = vector.load %arg3[%c0_33, %c0_34] : memref<2x1xf32, #tpu.memory_space<vmem>>, vector<2x1xf32>
    %74 = vector.broadcast %73 : vector<2x1xf32> to vector<2x8xf32>
    %75 = vector.broadcast %71 : vector<1x8xf32> to vector<2x8xf32>
    %76 = arith.mulf %74, %75 : vector<2x8xf32>
    %77 = vector.broadcast %72 : vector<1x8xf32> to vector<2x8xf32>
    %78 = arith.addf %76, %77 : vector<2x8xf32>
    %cst_35 = arith.constant 0.000000e+00 : f32
    %79 = vector.broadcast %cst_35 : f32 to vector<2x8xf32>
    %80 = arith.maximumf %78, %79 : vector<2x8xf32>
    %c70 = arith.constant 70 : index
    %c0_36 = arith.constant 0 : index
    %81 = vector.load %arg4[%c70, %c0_36] : memref<104x8xf32, #tpu.memory_space<vmem>>, vector<24x8xf32>
    %c94 = arith.constant 94 : index
    %c0_37 = arith.constant 0 : index
    %82 = vector.load %arg4[%c94, %c0_37] : memref<104x8xf32, #tpu.memory_space<vmem>>, vector<1x8xf32>
    %83 = tpu.concatenate %70, %59, %80 in 1 : vector<2x8xf32>, vector<2x8xf32>, vector<2x8xf32> -> vector<2x24xf32>
    %cst_38 = arith.constant dense<0.000000e+00> : vector<2x8xf32>
    %84 = tpu.matmul %83, %81, %cst_38 {dimension_numbers = #tpu.dot_dimension_numbers<[1], [0], [0], [1], [0, 0, 1, 1], [], []>} : vector<2x24xf32>, vector<24x8xf32>, vector<2x8xf32> -> vector<2x8xf32>
    %85 = vector.broadcast %82 : vector<1x8xf32> to vector<2x8xf32>
    %86 = arith.addf %84, %85 : vector<2x8xf32>
    %cst_39 = arith.constant 0.000000e+00 : f32
    %87 = vector.broadcast %cst_39 : f32 to vector<2x8xf32>
    %88 = arith.maximumf %86, %87 : vector<2x8xf32>
    %c95 = arith.constant 95 : index
    %c0_40 = arith.constant 0 : index
    %89 = vector.load %arg4[%c95, %c0_40] : memref<104x8xf32, #tpu.memory_space<vmem>>, vector<8x8xf32>
    %c103 = arith.constant 103 : index
    %c0_41 = arith.constant 0 : index
    %90 = vector.load %arg4[%c103, %c0_41] : memref<104x8xf32, #tpu.memory_space<vmem>>, vector<1x8xf32>
    %cst_42 = arith.constant dense<0.000000e+00> : vector<2x8xf32>
    %91 = tpu.matmul %88, %89, %cst_42 {dimension_numbers = #tpu.dot_dimension_numbers<[1], [0], [0], [1], [0, 0, 1, 1], [], []>} : vector<2x8xf32>, vector<8x8xf32>, vector<2x8xf32> -> vector<2x8xf32>
    %92 = vector.broadcast %90 : vector<1x8xf32> to vector<2x8xf32>
    %93 = arith.addf %91, %92 : vector<2x8xf32>
    %c0_43 = arith.constant 0 : index
    %c0_44 = arith.constant 0 : index
    %94 = vector.load %arg5[%c0_43, %c0_44] : memref<2x8xf32, #tpu.memory_space<vmem>>, vector<2x8xf32>
    tpu.vector_store %arg5[%c0_43, %c0_44], %93 {strides = array<i32>} : memref<2x8xf32, #tpu.memory_space<vmem>>, vector<2x8xf32>,
    return
  }
}

</mosaic_0001>

<llo_original>
// kernel: forward.1
$region0: #{forward.1}
  #allocation0 [shape = 'u32[]', space=smem, size = 0x4, offset = 0x4, fixed_abs, tag = 'smem constant byte address 0x4 - core index']
  #allocation1 [shape = 'u32[144,128]{1,0:T(1,128)}', space=vmem, size = 0x12000, scoped, tag = 'internal scratch']
  %s0 = inlined_call_operand.vmem [shape: f32[16,8], index: 0, kind: input, shape index: {}]
  %s1 = inlined_call_operand.vmem [shape: f32[16,16], index: 1, kind: input, shape index: {}]
  %s2 = inlined_call_operand.vmem [shape: f32[2,16], index: 2, kind: input, shape index: {}]
  %s3 = inlined_call_operand.vmem [shape: f32[2,1], index: 3, kind: input, shape index: {}]
  %s4 = inlined_call_operand.vmem [shape: f32[104,8], index: 4, kind: input, shape index: {}]
  %s5 = inlined_call_operand.vmem [shape: f32[2,8], index: 5, kind: output, shape index: {}]
  %s6 = sld [smem:[#allocation0]]
  $region30: #{forward.1} parent=0
    _
  %s8 = ssub.s32 1, %s6
  %s9 = scalar_select 0, %s8, %s6
  // Predicated region
  $region2: #{forward.1} parent=0 // pred_check
    _
  $region3: #{forward.1} parent=0 // pred_check_branch
    %11 = sbr.rel (0) target = $region5
  $region4: #{forward.1} parent=0 // pred_region
    _
  $region5: #{forward.1} parent=0 // pred_fallthru
    _
  // Predicated region
  $region6: #{forward.1} parent=0 // pred_check
    _
  $region7: #{forward.1} parent=0 // pred_check_branch
    %13 = sbr.rel (0) target = $region9
  $region8: #{forward.1} parent=0 // pred_region
    _
  $region9: #{forward.1} parent=0 // pred_fallthru
    _
  // Predicated region
  $region10: #{forward.1} parent=0 // pred_check
    _
  $region11: #{forward.1} parent=0 // pred_check_branch
    %15 = sbr.rel (0) target = $region13
  $region12: #{forward.1} parent=0 // pred_region
    _
  $region13: #{forward.1} parent=0 // pred_fallthru
    _
  // Predicated region
  $region14: #{forward.1} parent=0 // pred_check
    _
  $region15: #{forward.1} parent=0 // pred_check_branch
    %17 = sbr.rel (0) target = $region17
  $region16: #{forward.1} parent=0 // pred_region
    _
  $region17: #{forward.1} parent=0 // pred_fallthru
    _
  // Predicated region
  $region18: #{forward.1} parent=0 // pred_check
    _
  $region19: #{forward.1} parent=0 // pred_check_branch
    %19 = sbr.rel (0) target = $region21
  $region20: #{forward.1} parent=0 // pred_region
    _
  $region21: #{forward.1} parent=0 // pred_fallthru
    _
  %v21 = vld [vmem:[%s1] sm:$0xff]
  %v22 = vld [vmem:[%s1 + $0x8] sm:$0xff]
  %v23 = vpack.c.bf16 %v22, %v21
  %v24 = vld [vmem:[%s2] sm:$0x3]
  %v25 = vld [vmem:[%s0] sm:$0xff]
  %v26 = vld [vmem:[%s0 + $0x8] sm:$0xff]
  %v27 = vld [vmem:[%s4] sm:$0xff]
  %v28 = vld [vmem:[%s4 + $0x8] sm:$0xff]
  %v29 = vpack.c.bf16 %v28, %v27
  %v30 = vld [vmem:[%s4 + $0x10] sm:$0x1]
  %v31 = vpack.c.bf16 %v26, %v25
  %vm32 = vcmask 130048
  %v34 = vsel %vm32, %v23, 0
  %36 = vmatprep.subr.bf16.mxu0 0
  %37 = vmatpush1.bf16.msra.mxu0 %v31
  %38 = vmatprep.subr.bf16.mxu0 0
  %39 = vmatpush1.bf16.msra.mxu0 0
  %40 = vmatprep.subr.bf16.mxu0 0
  %41 = vmatpush1.bf16.msra.mxu0 0
  %42 = vmatprep.subr.bf16.mxu0 0
  %43 = vmatpush1.bf16.msra.mxu0 0
  %44 = vmatprep.subr.bf16.mxu0 0
  %45 = vmatpush1.bf16.msra.mxu0 0
  %46 = vmatprep.subr.bf16.mxu0 0
  %47 = vmatpush1.bf16.msra.mxu0 0
  %48 = vmatprep.subr.bf16.mxu0 0
  %49 = vmatpush1.bf16.msra.mxu0 0
  %50 = vmatprep.subr.bf16.mxu0 0
  %51 = vmatpush1.bf16.msra.mxu0 0
  %52 = vmatprep.subr.bf16.mxu0 0
  %53 = vmatpush1.bf16.msra.mxu0 0
  %54 = vmatprep.subr.bf16.mxu0 0
  %55 = vmatpush1.bf16.msra.mxu0 0
  %56 = vmatprep.subr.bf16.mxu0 0
  %57 = vmatpush1.bf16.msra.mxu0 0
  %58 = vmatprep.subr.bf16.mxu0 0
  %59 = vmatpush1.bf16.msra.mxu0 0
  %60 = vmatprep.subr.bf16.mxu0 0
  %61 = vmatpush1.bf16.msra.mxu0 0
  %62 = vmatprep.subr.bf16.mxu0 0
  %63 = vmatpush1.bf16.msra.mxu0 0
  %64 = vmatprep.subr.bf16.mxu0 0
  %65 = vmatpush1.bf16.msra.mxu0 0
  %66 = vmatprep.subr.bf16.mxu0 0
  %67 = vmatpush1.bf16.msra.mxu0 0
  %68 = vmatprep.mubr.bf16.mxu0 0
  %69 = vmatmul.mubr.bf16.gmra.mrb[0].mxu0 %v34
  %v70 = vpop.f32.mrb[0].mxu0
  %v71 = vadd.f32 0.0, %v70
  %v72 = vpop.f32.mrb[0].mxu0
  %v73 = vpop.f32.mrb[0].mxu0
  %v74 = vadd.f32 0.0, %v73
  %v75 = vpop.f32.mrb[0].mxu0
  %76 = vdwg.mxu0
  %79 = vrot.lane.b32.xlu0 %v25, 8
  %v80 = vpop.permute.xlu0 %79
  %81 = vrot.lane.b32.xlu0 %v26, 8
  %v82 = vpop.permute.xlu0 %81
  %vm85 = vcmask 64512
  %v86 = vsel %vm85, %v71, %v80
  %v87 = vsel %vm85, %v74, %v82
  %v88 = vpack.c.bf16 %v87, %v86
  %v89 = vlaneseq
  %v90 = vshrl.u32 %v89, 7
  %v91 = vsub.s32 0, %v90
  %v92 = vrot.slane %v30, %v91
  %v94 = vsel %vm32, %v88, 0
  %96 = vmatprep.subr.bf16.mxu0 0
  %97 = vmatpush1.bf16.msra.mxu0 %v29
  %98 = vmatprep.subr.bf16.mxu0 0
  %99 = vmatpush1.bf16.msra.mxu0 0
  %100 = vmatprep.subr.bf16.mxu0 0
  %101 = vmatpush1.bf16.msra.mxu0 0
  %102 = vmatprep.subr.bf16.mxu0 0
  %103 = vmatpush1.bf16.msra.mxu0 0
  %104 = vmatprep.subr.bf16.mxu0 0
  %105 = vmatpush1.bf16.msra.mxu0 0
  %106 = vmatprep.subr.bf16.mxu0 0
  %107 = vmatpush1.bf16.msra.mxu0 0
  %108 = vmatprep.subr.bf16.mxu0 0
  %109 = vmatpush1.bf16.msra.mxu0 0
  %110 = vmatprep.subr.bf16.mxu0 0
  %111 = vmatpush1.bf16.msra.mxu0 0
  %112 = vmatprep.subr.bf16.mxu0 0
  %113 = vmatpush1.bf16.msra.mxu0 0
  %114 = vmatprep.subr.bf16.mxu0 0
  %115 = vmatpush1.bf16.msra.mxu0 0
  %116 = vmatprep.subr.bf16.mxu0 0
  %117 = vmatpush1.bf16.msra.mxu0 0
  %118 = vmatprep.subr.bf16.mxu0 0
  %119 = vmatpush1.bf16.msra.mxu0 0
  %120 = vmatprep.subr.bf16.mxu0 0
  %121 = vmatpush1.bf16.msra.mxu0 0
  %122 = vmatprep.subr.bf16.mxu0 0
  %123 = vmatpush1.bf16.msra.mxu0 0
  %124 = vmatprep.subr.bf16.mxu0 0
  %125 = vmatpush1.bf16.msra.mxu0 0
  %126 = vmatprep.subr.bf16.mxu0 0
  %127 = vmatpush1.bf16.msra.mxu0 0
  %128 = vmatprep.mubr.bf16.mxu0 0
  %129 = vmatmul.mubr.bf16.gmra.mrb[0].mxu0 %v94
  %v130 = vpop.f32.mrb[0].mxu0
  %v131 = vadd.f32 %v92, %v130
  %v132 = vpop.f32.mrb[0].mxu0
  %v133 = vpop.f32.mrb[0].mxu0
  %v134 = vadd.f32 %v92, %v133
  %v135 = vpop.f32.mrb[0].mxu0
  %136 = vdwg.mxu0
  %v137 = vmax.f32 %v131, 0.0
  %v138 = vmax.f32 %v134, 0.0
  %v139 = vld [vmem:[%s4 + $0x11] sm:$0xff]
  %v140 = vld [vmem:[%s4 + $0x19] sm:$0xff]
  %v141 = vpack.c.bf16 %v140, %v139
  %v142 = vld [vmem:[%s4 + $0x21] sm:$0x1]
  %v143 = vpack.c.bf16 %v138, %v137
  %144 = vmatprep.subr.bf16.mxu0 0
  %145 = vmatpush1.bf16.msra.mxu0 %v143
  %146 = vmatprep.subr.bf16.mxu0 0
  %147 = vmatpush1.bf16.msra.mxu0 0
  %148 = vmatprep.subr.bf16.mxu0 0
  %149 = vmatpush1.bf16.msra.mxu0 0
  %150 = vmatprep.subr.bf16.mxu0 0
  %151 = vmatpush1.bf16.msra.mxu0 0
  %152 = vmatprep.subr.bf16.mxu0 0
  %153 = vmatpush1.bf16.msra.mxu0 0
  %154 = vmatprep.subr.bf16.mxu0 0
  %155 = vmatpush1.bf16.msra.mxu0 0
  %156 = vmatprep.subr.bf16.mxu0 0
  %157 = vmatpush1.bf16.msra.mxu0 0
  %158 = vmatprep.subr.bf16.mxu0 0
  %159 = vmatpush1.bf16.msra.mxu0 0
  %160 = vmatprep.subr.bf16.mxu0 0
  %161 = vmatpush1.bf16.msra.mxu0 0
  %162 = vmatprep.subr.bf16.mxu0 0
  %163 = vmatpush1.bf16.msra.mxu0 0
  %164 = vmatprep.subr.bf16.mxu0 0
  %165 = vmatpush1.bf16.msra.mxu0 0
  %166 = vmatprep.subr.bf16.mxu0 0
  %167 = vmatpush1.bf16.msra.mxu0 0
  %168 = vmatprep.subr.bf16.mxu0 0
  %169 = vmatpush1.bf16.msra.mxu0 0
  %170 = vmatprep.subr.bf16.mxu0 0
  %171 = vmatpush1.bf16.msra.mxu0 0
  %172 = vmatprep.subr.bf16.mxu0 0
  %173 = vmatpush1.bf16.msra.mxu0 0
  %174 = vmatprep.subr.bf16.mxu0 0
  %175 = vmatpush1.bf16.msra.mxu0 0
  %176 = vmatprep.mubr.bf16.mxu0 0
  %177 = vmatmul.mubr.bf16.gmra.mrb[0].mxu0 %v34
  %v178 = vpop.f32.mrb[0].mxu0
  %v179 = vadd.f32 0.0, %v178
  %v180 = vpop.f32.mrb[0].mxu0
  %v181 = vpop.f32.mrb[0].mxu0
  %v182 = vadd.f32 0.0, %v181
  %v183 = vpop.f32.mrb[0].mxu0
  %184 = vdwg.mxu0
  %187 = vrot.lane.b32.xlu0 %v137, 8
  %v188 = vpop.permute.xlu0 %187
  %189 = vrot.lane.b32.xlu0 %v138, 8
  %v190 = vpop.permute.xlu0 %189
  %v193 = vsel %vm85, %v179, %v188
  %v194 = vsel %vm85, %v182, %v190
  %v195 = vpack.c.bf16 %v194, %v193
  %v196 = vlaneseq
  %v197 = vshrl.u32 %v196, 7
  %v198 = vsub.s32 0, %v197
  %v199 = vrot.slane %v142, %v198
  %v201 = vsel %vm32, %v195, 0
  %203 = vmatprep.subr.bf16.mxu0 0
  %204 = vmatpush1.bf16.msra.mxu0 %v141
  %205 = vmatprep.subr.bf16.mxu0 0
  %206 = vmatpush1.bf16.msra.mxu0 0
  %207 = vmatprep.subr.bf16.mxu0 0
  %208 = vmatpush1.bf16.msra.mxu0 0
  %209 = vmatprep.subr.bf16.mxu0 0
  %210 = vmatpush1.bf16.msra.mxu0 0
  %211 = vmatprep.subr.bf16.mxu0 0
  %212 = vmatpush1.bf16.msra.mxu0 0
  %213 = vmatprep.subr.bf16.mxu0 0
  %214 = vmatpush1.bf16.msra.mxu0 0
  %215 = vmatprep.subr.bf16.mxu0 0
  %216 = vmatpush1.bf16.msra.mxu0 0
  %217 = vmatprep.subr.bf16.mxu0 0
  %218 = vmatpush1.bf16.msra.mxu0 0
  %219 = vmatprep.subr.bf16.mxu0 0
  %220 = vmatpush1.bf16.msra.mxu0 0
  %221 = vmatprep.subr.bf16.mxu0 0
  %222 = vmatpush1.bf16.msra.mxu0 0
  %223 = vmatprep.subr.bf16.mxu0 0
  %224 = vmatpush1.bf16.msra.mxu0 0
  %225 = vmatprep.subr.bf16.mxu0 0
  %226 = vmatpush1.bf16.msra.mxu0 0
  %227 = vmatprep.subr.bf16.mxu0 0
  %228 = vmatpush1.bf16.msra.mxu0 0
  %229 = vmatprep.subr.bf16.mxu0 0
  %230 = vmatpush1.bf16.msra.mxu0 0
  %231 = vmatprep.subr.bf16.mxu0 0
  %232 = vmatpush1.bf16.msra.mxu0 0
  %233 = vmatprep.subr.bf16.mxu0 0
  %234 = vmatpush1.bf16.msra.mxu0 0
  %235 = vmatprep.mubr.bf16.mxu0 0
  %236 = vmatmul.mubr.bf16.gmra.mrb[0].mxu0 %v201
  %v237 = vpop.f32.mrb[0].mxu0
  %v238 = vadd.f32 %v199, %v237
  %v239 = vpop.f32.mrb[0].mxu0
  %v240 = vpop.f32.mrb[0].mxu0
  %v241 = vadd.f32 %v199, %v240
  %v242 = vpop.f32.mrb[0].mxu0
  %243 = vdwg.mxu0
  %v244 = vmax.f32 %v238, 0.0
  %v245 = vmax.f32 %v241, 0.0
  %v246 = vld [vmem:[%s4 + $0x22] sm:$0xff]
  %v247 = vld [vmem:[%s4 + $0x2a] sm:$0xff]
  %v248 = vpack.c.bf16 %v247, %v246
  %v249 = vld [vmem:[%s4 + $0x32] sm:$0x1]
  %v250 = vpack.c.bf16 %v245, %v244
  %251 = vmatprep.subr.bf16.mxu0 0
  %252 = vmatpush1.bf16.msra.mxu0 %v250
  %253 = vmatprep.subr.bf16.mxu0 0
  %254 = vmatpush1.bf16.msra.mxu0 0
  %255 = vmatprep.subr.bf16.mxu0 0
  %256 = vmatpush1.bf16.msra.mxu0 0
  %257 = vmatprep.subr.bf16.mxu0 0
  %258 = vmatpush1.bf16.msra.mxu0 0
  %259 = vmatprep.subr.bf16.mxu0 0
  %260 = vmatpush1.bf16.msra.mxu0 0
  %261 = vmatprep.subr.bf16.mxu0 0
  %262 = vmatpush1.bf16.msra.mxu0 0
  %263 = vmatprep.subr.bf16.mxu0 0
  %264 = vmatpush1.bf16.msra.mxu0 0
  %265 = vmatprep.subr.bf16.mxu0 0
  %266 = vmatpush1.bf16.msra.mxu0 0
  %267 = vmatprep.subr.bf16.mxu0 0
  %268 = vmatpush1.bf16.msra.mxu0 0
  %269 = vmatprep.subr.bf16.mxu0 0
  %270 = vmatpush1.bf16.msra.mxu0 0
  %271 = vmatprep.subr.bf16.mxu0 0
  %272 = vmatpush1.bf16.msra.mxu0 0
  %273 = vmatprep.subr.bf16.mxu0 0
  %274 = vmatpush1.bf16.msra.mxu0 0
  %275 = vmatprep.subr.bf16.mxu0 0
  %276 = vmatpush1.bf16.msra.mxu0 0
  %277 = vmatprep.subr.bf16.mxu0 0
  %278 = vmatpush1.bf16.msra.mxu0 0
  %279 = vmatprep.subr.bf16.mxu0 0
  %280 = vmatpush1.bf16.msra.mxu0 0
  %281 = vmatprep.subr.bf16.mxu0 0
  %282 = vmatpush1.bf16.msra.mxu0 0
  %283 = vmatprep.mubr.bf16.mxu0 0
  %284 = vmatmul.mubr.bf16.gmra.mrb[0].mxu0 %v34
  %v285 = vpop.f32.mrb[0].mxu0
  %v286 = vadd.f32 0.0, %v285
  %v287 = vpop.f32.mrb[0].mxu0
  %v288 = vpop.f32.mrb[0].mxu0
  %v289 = vadd.f32 0.0, %v288
  %v290 = vpop.f32.mrb[0].mxu0
  %291 = vdwg.mxu0
  %294 = vrot.lane.b32.xlu0 %v244, 8
  %v295 = vpop.permute.xlu0 %294
  %296 = vrot.lane.b32.xlu0 %v245, 8
  %v297 = vpop.permute.xlu0 %296
  %v300 = vsel %vm85, %v286, %v295
  %v301 = vsel %vm85, %v289, %v297
  %v302 = vpack.c.bf16 %v301, %v300
  %v303 = vlaneseq
  %v304 = vshrl.u32 %v303, 7
  %v305 = vsub.s32 0, %v304
  %v306 = vrot.slane %v249, %v305
  %v308 = vsel %vm32, %v302, 0
  %310 = vmatprep.subr.bf16.mxu0 0
  %311 = vmatpush1.bf16.msra.mxu0 %v248
  %312 = vmatprep.subr.bf16.mxu0 0
  %313 = vmatpush1.bf16.msra.mxu0 0
  %314 = vmatprep.subr.bf16.mxu0 0
  %315 = vmatpush1.bf16.msra.mxu0 0
  %316 = vmatprep.subr.bf16.mxu0 0
  %317 = vmatpush1.bf16.msra.mxu0 0
  %318 = vmatprep.subr.bf16.mxu0 0
  %319 = vmatpush1.bf16.msra.mxu0 0
  %320 = vmatprep.subr.bf16.mxu0 0
  %321 = vmatpush1.bf16.msra.mxu0 0
  %322 = vmatprep.subr.bf16.mxu0 0
  %323 = vmatpush1.bf16.msra.mxu0 0
  %324 = vmatprep.subr.bf16.mxu0 0
  %325 = vmatpush1.bf16.msra.mxu0 0
  %326 = vmatprep.subr.bf16.mxu0 0
  %327 = vmatpush1.bf16.msra.mxu0 0
  %328 = vmatprep.subr.bf16.mxu0 0
  %329 = vmatpush1.bf16.msra.mxu0 0
  %330 = vmatprep.subr.bf16.mxu0 0
  %331 = vmatpush1.bf16.msra.mxu0 0
  %332 = vmatprep.subr.bf16.mxu0 0
  %333 = vmatpush1.bf16.msra.mxu0 0
  %334 = vmatprep.subr.bf16.mxu0 0
  %335 = vmatpush1.bf16.msra.mxu0 0
  %336 = vmatprep.subr.bf16.mxu0 0
  %337 = vmatpush1.bf16.msra.mxu0 0
  %338 = vmatprep.subr.bf16.mxu0 0
  %339 = vmatpush1.bf16.msra.mxu0 0
  %340 = vmatprep.subr.bf16.mxu0 0
  %341 = vmatpush1.bf16.msra.mxu0 0
  %342 = vmatprep.mubr.bf16.mxu0 0
  %343 = vmatmul.mubr.bf16.gmra.mrb[0].mxu0 %v308
  %v344 = vpop.f32.mrb[0].mxu0
  %v345 = vadd.f32 %v306, %v344
  %v346 = vpop.f32.mrb[0].mxu0
  %v347 = vpop.f32.mrb[0].mxu0
  %v348 = vadd.f32 %v306, %v347
  %v349 = vpop.f32.mrb[0].mxu0
  %350 = vdwg.mxu0
  %v351 = vmax.f32 %v345, 0.0
  %v352 = vmax.f32 %v348, 0.0
  %v353 = vld [vmem:[%s4 + $0x33] sm:$0xff]
  %v354 = vld [vmem:[%s4 + $0x3b] sm:$0xff]
  %v355 = vpack.c.bf16 %v354, %v353
  %v356 = vld [vmem:[%s4 + $0x43] sm:$0x1]
  %v357 = vpack.c.bf16 %v352, %v351
  %358 = vmatprep.subr.bf16.mxu0 0
  %359 = vmatpush1.bf16.msra.mxu0 %v357
  %360 = vmatprep.subr.bf16.mxu0 0
  %361 = vmatpush1.bf16.msra.mxu0 0
  %362 = vmatprep.subr.bf16.mxu0 0
  %363 = vmatpush1.bf16.msra.mxu0 0
  %364 = vmatprep.subr.bf16.mxu0 0
  %365 = vmatpush1.bf16.msra.mxu0 0
  %366 = vmatprep.subr.bf16.mxu0 0
  %367 = vmatpush1.bf16.msra.mxu0 0
  %368 = vmatprep.subr.bf16.mxu0 0
  %369 = vmatpush1.bf16.msra.mxu0 0
  %370 = vmatprep.subr.bf16.mxu0 0
  %371 = vmatpush1.bf16.msra.mxu0 0
  %372 = vmatprep.subr.bf16.mxu0 0
  %373 = vmatpush1.bf16.msra.mxu0 0
  %374 = vmatprep.subr.bf16.mxu0 0
  %375 = vmatpush1.bf16.msra.mxu0 0
  %376 = vmatprep.subr.bf16.mxu0 0
  %377 = vmatpush1.bf16.msra.mxu0 0
  %378 = vmatprep.subr.bf16.mxu0 0
  %379 = vmatpush1.bf16.msra.mxu0 0
  %380 = vmatprep.subr.bf16.mxu0 0
  %381 = vmatpush1.bf16.msra.mxu0 0
  %382 = vmatprep.subr.bf16.mxu0 0
  %383 = vmatpush1.bf16.msra.mxu0 0
  %384 = vmatprep.subr.bf16.mxu0 0
  %385 = vmatpush1.bf16.msra.mxu0 0
  %386 = vmatprep.subr.bf16.mxu0 0
  %387 = vmatpush1.bf16.msra.mxu0 0
  %388 = vmatprep.subr.bf16.mxu0 0
  %389 = vmatpush1.bf16.msra.mxu0 0
  %390 = vmatprep.mubr.bf16.mxu0 0
  %391 = vmatmul.mubr.bf16.gmra.mrb[0].mxu0 %v34
  %v392 = vpop.f32.mrb[0].mxu0
  %v393 = vadd.f32 0.0, %v392
  %v394 = vpop.f32.mrb[0].mxu0
  %v395 = vpop.f32.mrb[0].mxu0
  %v396 = vadd.f32 0.0, %v395
  %v397 = vpop.f32.mrb[0].mxu0
  %398 = vdwg.mxu0
  %401 = vrot.lane.b32.xlu0 %v351, 8
  %v402 = vpop.permute.xlu0 %401
  %403 = vrot.lane.b32.xlu0 %v352, 8
  %v404 = vpop.permute.xlu0 %403
  %v407 = vsel %vm85, %v393, %v402
  %v408 = vsel %vm85, %v396, %v404
  %v409 = vpack.c.bf16 %v408, %v407
  %v410 = vlaneseq
  %v411 = vshrl.u32 %v410, 7
  %v412 = vsub.s32 0, %v411
  %v413 = vrot.slane %v356, %v412
  %v415 = vsel %vm32, %v409, 0
  %417 = vmatprep.subr.bf16.mxu0 0
  %418 = vmatpush1.bf16.msra.mxu0 %v355
  %419 = vmatprep.subr.bf16.mxu0 0
  %420 = vmatpush1.bf16.msra.mxu0 0
  %421 = vmatprep.subr.bf16.mxu0 0
  %422 = vmatpush1.bf16.msra.mxu0 0
  %423 = vmatprep.subr.bf16.mxu0 0
  %424 = vmatpush1.bf16.msra.mxu0 0
  %425 = vmatprep.subr.bf16.mxu0 0
  %426 = vmatpush1.bf16.msra.mxu0 0
  %427 = vmatprep.subr.bf16.mxu0 0
  %428 = vmatpush1.bf16.msra.mxu0 0
  %429 = vmatprep.subr.bf16.mxu0 0
  %430 = vmatpush1.bf16.msra.mxu0 0
  %431 = vmatprep.subr.bf16.mxu0 0
  %432 = vmatpush1.bf16.msra.mxu0 0
  %433 = vmatprep.subr.bf16.mxu0 0
  %434 = vmatpush1.bf16.msra.mxu0 0
  %435 = vmatprep.subr.bf16.mxu0 0
  %436 = vmatpush1.bf16.msra.mxu0 0
  %437 = vmatprep.subr.bf16.mxu0 0
  %438 = vmatpush1.bf16.msra.mxu0 0
  %439 = vmatprep.subr.bf16.mxu0 0
  %440 = vmatpush1.bf16.msra.mxu0 0
  %441 = vmatprep.subr.bf16.mxu0 0
  %442 = vmatpush1.bf16.msra.mxu0 0
  %443 = vmatprep.subr.bf16.mxu0 0
  %444 = vmatpush1.bf16.msra.mxu0 0
  %445 = vmatprep.subr.bf16.mxu0 0
  %446 = vmatpush1.bf16.msra.mxu0 0
  %447 = vmatprep.subr.bf16.mxu0 0
  %448 = vmatpush1.bf16.msra.mxu0 0
  %449 = vmatprep.mubr.bf16.mxu0 0
  %450 = vmatmul.mubr.bf16.gmra.mrb[0].mxu0 %v415
  %v451 = vpop.f32.mrb[0].mxu0
  %v452 = vadd.f32 %v413, %v451
  %v453 = vpop.f32.mrb[0].mxu0
  %v454 = vpop.f32.mrb[0].mxu0
  %v455 = vadd.f32 %v413, %v454
  %v456 = vpop.f32.mrb[0].mxu0
  %457 = vdwg.mxu0
  %v458 = vmax.f32 %v452, 0.0
  %v459 = vmax.f32 %v455, 0.0
  %vm460 = vcmask 123904
  %v461 = vsel %vm460, %v24, 0.0
  %462 = vadd.xlane.f32.xlu0 %v461
  %v463 = vpop.xlane.xlu0 %462
  %v464 = vmax.f32 %v463, 1.0
  %v465 = vrcp.pop %v464
  %v467 = vsel %vm32, %v24, 0
  %469 = vmatprep.subr.mxu0 0.0
  %470 = vmatpush1.msra.mxu0 %v458
  %471 = vmatprep.subr.mxu0 0.0
  %472 = vmatpush1.msra.mxu0 %v459
  %473 = vmatprep.subr.mxu0 0.0
  %474 = vmatpush1.msra.mxu0 0.0
  %475 = vmatprep.subr.mxu0 0.0
  %476 = vmatpush1.msra.mxu0 0.0
  %477 = vmatprep.subr.mxu0 0.0
  %478 = vmatpush1.msra.mxu0 0.0
  %479 = vmatprep.subr.mxu0 0.0
  %480 = vmatpush1.msra.mxu0 0.0
  %481 = vmatprep.subr.mxu0 0.0
  %482 = vmatpush1.msra.mxu0 0.0
  %483 = vmatprep.subr.mxu0 0.0
  %484 = vmatpush1.msra.mxu0 0.0
  %485 = vmatprep.subr.mxu0 0.0
  %486 = vmatpush1.msra.mxu0 0.0
  %487 = vmatprep.subr.mxu0 0.0
  %488 = vmatpush1.msra.mxu0 0.0
  %489 = vmatprep.subr.mxu0 0.0
  %490 = vmatpush1.msra.mxu0 0.0
  %491 = vmatprep.subr.mxu0 0.0
  %492 = vmatpush1.msra.mxu0 0.0
  %493 = vmatprep.subr.mxu0 0.0
  %494 = vmatpush1.msra.mxu0 0.0
  %495 = vmatprep.subr.mxu0 0.0
  %496 = vmatpush1.msra.mxu0 0.0
  %497 = vmatprep.subr.mxu0 0.0
  %498 = vmatpush1.msra.mxu0 0.0
  %499 = vmatprep.subr.mxu0 0.0
  %500 = vmatpush1.msra.mxu0 0.0
  %501 = vmatprep.subr.mxu0 0.0
  %502 = vmatpush1.msra.mxu0 0.0
  %503 = vmatprep.subr.mxu0 0.0
  %504 = vmatpush1.msra.mxu0 0.0
  %505 = vmatprep.subr.mxu0 0.0
  %506 = vmatpush1.msra.mxu0 0.0
  %507 = vmatprep.subr.mxu0 0.0
  %508 = vmatpush1.msra.mxu0 0.0
  %509 = vmatprep.subr.mxu0 0.0
  %510 = vmatpush1.msra.mxu0 0.0
  %511 = vmatprep.subr.mxu0 0.0
  %512 = vmatpush1.msra.mxu0 0.0
  %513 = vmatprep.subr.mxu0 0.0
  %514 = vmatpush1.msra.mxu0 0.0
  %515 = vmatprep.subr.mxu0 0.0
  %516 = vmatpush1.msra.mxu0 0.0
  %517 = vmatprep.subr.mxu0 0.0
  %518 = vmatpush1.msra.mxu0 0.0
  %519 = vmatprep.subr.mxu0 0.0
  %520 = vmatpush1.msra.mxu0 0.0
  %521 = vmatprep.subr.mxu0 0.0
  %522 = vmatpush1.msra.mxu0 0.0
  %523 = vmatprep.subr.mxu0 0.0
  %524 = vmatpush1.msra.mxu0 0.0
  %525 = vmatprep.subr.mxu0 0.0
  %526 = vmatpush1.msra.mxu0 0.0
  %527 = vmatprep.subr.mxu0 0.0
  %528 = vmatpush1.msra.mxu0 0.0
  %529 = vmatprep.subr.mxu0 0.0
  %530 = vmatpush1.msra.mxu0 0.0
  %531 = vmatprep.subr.mxu0 0.0
  %532 = vmatpush1.msra.mxu0 0.0
  %533 = vmatprep.mubr.f32.mxu0 0.0
  %534 = vmatmul.mubr.f32.gmra.mrb[0].mxu0 %v467
  %v535 = vpop.f32.mrb[0].mxu0
  %v536 = vadd.f32 0.0, %v535
  %v537 = vpop.f32.mrb[0].mxu0
  %538 = vdwg.mxu0
  %v539 = vmul.f32 %v536, %v465
  %v540 = vlaneseq
  %v541 = vshrl.u32 %v540, 7
  %v542 = vsub.s32 0, %v541
  %v543 = vrot.slane %v24, %v542
  %545 = vbcast.lane.b32.xlu0 %v543, 256
  %v546 = vpop.permute.xlu0 %545
  %s548 = sor.u32 256, 8
  %549 = vbcast.lane.b32.xlu0 %v543, %s548
  %v550 = vpop.permute.xlu0 %549
  %v551 = vlaneseq
  %v552 = vshrl.u32 %v551, 7
  %v553 = vsub.s32 1, %v552
  %v554 = vrot.slane %v24, %v553
  %556 = vbcast.lane.b32.xlu0 %v554, 256
  %v557 = vpop.permute.xlu0 %556
  %s559 = sor.u32 256, 8
  %560 = vbcast.lane.b32.xlu0 %v554, %s559
  %v561 = vpop.permute.xlu0 %560
  %vm562 = vcmp.gt.f32.partialorder %v546, 0.5
  %vm563 = vcmp.gt.f32.partialorder %v550, 0.5
  %vm564 = vcmp.gt.f32.partialorder %v557, 0.5
  %vm565 = vcmp.gt.f32.partialorder %v561, 0.5
  %v566 = vsel %vm562, 1, 0
  %v567 = vsel %vm563, 1, 0
  %v568 = vsel %vm564, 1, 0
  %v569 = vsel %vm565, 1, 0
  %vm570 = vcmp.eq.s32.totalorder %v566, 1
  %vm571 = vcmp.eq.s32.totalorder %v567, 1
  %vm572 = vcmp.eq.s32.totalorder %v568, 1
  %vm573 = vcmp.eq.s32.totalorder %v569, 1
  %v574 = vsel %vm570, %v458, -1e+30
  %v575 = vsel %vm571, %v459, -1e+30
  %v576 = vsel %vm572, %v458, -1e+30
  %v577 = vsel %vm573, %v459, -1e+30
  %v578 = vsel %vm85, %v574, -inf
  %v579 = vsel %vm85, %v575, -inf
  %v580 = vmax.f32 %v578, %v579
  %v581 = vrot.slane %v580, 4
  %v582 = vmax.f32 %v580, %v581
  %v583 = vrot.slane %v582, 2
  %v584 = vmax.f32 %v582, %v583
  %v585 = vrot.slane %v584, 1
  %v586 = vmax.f32 %v584, %v585
  %v587 = vsel %vm85, %v576, -inf
  %v588 = vsel %vm85, %v577, -inf
  %v589 = vmax.f32 %v587, %v588
  %v590 = vrot.slane %v589, 4
  %v591 = vmax.f32 %v589, %v590
  %v592 = vrot.slane %v591, 2
  %v593 = vmax.f32 %v591, %v592
  %v594 = vrot.slane %v593, 1
  %v595 = vmax.f32 %v593, %v594
  %v596 = vld [vmem:[%s4 + $0x44] sm:$0x1]
  %v597 = vld [vmem:[%s4 + $0x45] sm:$0x1]
  %v598 = vld [vmem:[%s3] sm:$0x3]
  %600 = vset.pattern.permute.xlu0 0
  %601 = vperm.xlu0 %600, %v598
  %v602 = vpop.permute.xlu0 %601
  %v604 = vlaneseq
  %v605 = vshrl.u32 %v604, 7
  %v606 = vsub.s32 0, %v605
  %v607 = vrot.slane %v596, %v606
  %v608 = vmul.f32 %v602, %v607
  %v609 = vlaneseq
  %v610 = vshrl.u32 %v609, 7
  %v611 = vsub.s32 0, %v610
  %v612 = vrot.slane %v597, %v611
  %v613 = vadd.f32 %v608, %v612
  %v614 = vmax.f32 %v613, 0.0
  %v615 = vld [vmem:[%s4 + $0x46] sm:$0xff]
  %v616 = vld [vmem:[%s4 + $0x4e] sm:$0xff]
  %v617 = vld [vmem:[%s4 + $0x56] sm:$0xff]
  %v618 = vld [vmem:[%s4 + $0x5e] sm:$0x1]
  %vm621 = vcmask 1041409
  %v622 = vsel %vm621, %v595, %v586
  %625 = vrot.lane.b32.xlu0 %v539, 8
  %v626 = vpop.permute.xlu0 %625
  %629 = vrot.lane.b32.xlu0 %v614, 16
  %v630 = vpop.permute.xlu0 %629
  %v632 = vsel %vm85, %v622, %v626
  %v633 = vsel %vm32, %v632, %v630
  %v634 = vlaneseq
  %v635 = vshrl.u32 %v634, 7
  %v636 = vsub.s32 0, %v635
  %v637 = vrot.slane %v618, %v636
  %vm638 = vcmask 195584
  %v640 = vsel %vm638, %v633, 0
  %642 = vmatprep.subr.mxu0 0.0
  %643 = vmatpush1.msra.mxu0 %v615
  %644 = vmatprep.subr.mxu0 0.0
  %645 = vmatpush1.msra.mxu0 %v616
  %646 = vmatprep.subr.mxu0 0.0
  %647 = vmatpush1.msra.mxu0 %v617
  %648 = vmatprep.subr.mxu0 0.0
  %649 = vmatpush1.msra.mxu0 0.0
  %650 = vmatprep.subr.mxu0 0.0
  %651 = vmatpush1.msra.mxu0 0.0
  %652 = vmatprep.subr.mxu0 0.0
  %653 = vmatpush1.msra.mxu0 0.0
  %654 = vmatprep.subr.mxu0 0.0
  %655 = vmatpush1.msra.mxu0 0.0
  %656 = vmatprep.subr.mxu0 0.0
  %657 = vmatpush1.msra.mxu0 0.0
  %658 = vmatprep.subr.mxu0 0.0
  %659 = vmatpush1.msra.mxu0 0.0
  %660 = vmatprep.subr.mxu0 0.0
  %661 = vmatpush1.msra.mxu0 0.0
  %662 = vmatprep.subr.mxu0 0.0
  %663 = vmatpush1.msra.mxu0 0.0
  %664 = vmatprep.subr.mxu0 0.0
  %665 = vmatpush1.msra.mxu0 0.0
  %666 = vmatprep.subr.mxu0 0.0
  %667 = vmatpush1.msra.mxu0 0.0
  %668 = vmatprep.subr.mxu0 0.0
  %669 = vmatpush1.msra.mxu0 0.0
  %670 = vmatprep.subr.mxu0 0.0
  %671 = vmatpush1.msra.mxu0 0.0
  %672 = vmatprep.subr.mxu0 0.0
  %673 = vmatpush1.msra.mxu0 0.0
  %674 = vmatprep.subr.mxu0 0.0
  %675 = vmatpush1.msra.mxu0 0.0
  %676 = vmatprep.subr.mxu0 0.0
  %677 = vmatpush1.msra.mxu0 0.0
  %678 = vmatprep.subr.mxu0 0.0
  %679 = vmatpush1.msra.mxu0 0.0
  %680 = vmatprep.subr.mxu0 0.0
  %681 = vmatpush1.msra.mxu0 0.0
  %682 = vmatprep.subr.mxu0 0.0
  %683 = vmatpush1.msra.mxu0 0.0
  %684 = vmatprep.subr.mxu0 0.0
  %685 = vmatpush1.msra.mxu0 0.0
  %686 = vmatprep.subr.mxu0 0.0
  %687 = vmatpush1.msra.mxu0 0.0
  %688 = vmatprep.subr.mxu0 0.0
  %689 = vmatpush1.msra.mxu0 0.0
  %690 = vmatprep.subr.mxu0 0.0
  %691 = vmatpush1.msra.mxu0 0.0
  %692 = vmatprep.subr.mxu0 0.0
  %693 = vmatpush1.msra.mxu0 0.0
  %694 = vmatprep.subr.mxu0 0.0
  %695 = vmatpush1.msra.mxu0 0.0
  %696 = vmatprep.subr.mxu0 0.0
  %697 = vmatpush1.msra.mxu0 0.0
  %698 = vmatprep.subr.mxu0 0.0
  %699 = vmatpush1.msra.mxu0 0.0
  %700 = vmatprep.subr.mxu0 0.0
  %701 = vmatpush1.msra.mxu0 0.0
  %702 = vmatprep.subr.mxu0 0.0
  %703 = vmatpush1.msra.mxu0 0.0
  %704 = vmatprep.subr.mxu0 0.0
  %705 = vmatpush1.msra.mxu0 0.0
  %706 = vmatprep.mubr.f32.mxu0 0.0
  %707 = vmatmul.mubr.f32.gmra.mrb[0].mxu0 %v640
  %v708 = vpop.f32.mrb[0].mxu0
  %v709 = vadd.f32 %v637, %v708
  %v710 = vpop.f32.mrb[0].mxu0
  %711 = vdwg.mxu0
  %v712 = vmax.f32 %v709, 0.0
  %v713 = vld [vmem:[%s4 + $0x5f] sm:$0xff]
  %v714 = vld [vmem:[%s4 + $0x67] sm:$0x1]
  %v715 = vlaneseq
  %v716 = vshrl.u32 %v715, 7
  %v717 = vsub.s32 0, %v716
  %v718 = vrot.slane %v714, %v717
  %v720 = vsel %vm85, %v712, 0
  %722 = vmatprep.subr.mxu0 0.0
  %723 = vmatpush1.msra.mxu0 %v713
  %724 = vmatprep.subr.mxu0 0.0
  %725 = vmatpush1.msra.mxu0 0.0
  %726 = vmatprep.subr.mxu0 0.0
  %727 = vmatpush1.msra.mxu0 0.0
  %728 = vmatprep.subr.mxu0 0.0
  %729 = vmatpush1.msra.mxu0 0.0
  %730 = vmatprep.subr.mxu0 0.0
  %731 = vmatpush1.msra.mxu0 0.0
  %732 = vmatprep.subr.mxu0 0.0
  %733 = vmatpush1.msra.mxu0 0.0
  %734 = vmatprep.subr.mxu0 0.0
  %735 = vmatpush1.msra.mxu0 0.0
  %736 = vmatprep.subr.mxu0 0.0
  %737 = vmatpush1.msra.mxu0 0.0
  %738 = vmatprep.subr.mxu0 0.0
  %739 = vmatpush1.msra.mxu0 0.0
  %740 = vmatprep.subr.mxu0 0.0
  %741 = vmatpush1.msra.mxu0 0.0
  %742 = vmatprep.subr.mxu0 0.0
  %743 = vmatpush1.msra.mxu0 0.0
  %744 = vmatprep.subr.mxu0 0.0
  %745 = vmatpush1.msra.mxu0 0.0
  %746 = vmatprep.subr.mxu0 0.0
  %747 = vmatpush1.msra.mxu0 0.0
  %748 = vmatprep.subr.mxu0 0.0
  %749 = vmatpush1.msra.mxu0 0.0
  %750 = vmatprep.subr.mxu0 0.0
  %751 = vmatpush1.msra.mxu0 0.0
  %752 = vmatprep.subr.mxu0 0.0
  %753 = vmatpush1.msra.mxu0 0.0
  %754 = vmatprep.subr.mxu0 0.0
  %755 = vmatpush1.msra.mxu0 0.0
  %756 = vmatprep.subr.mxu0 0.0
  %757 = vmatpush1.msra.mxu0 0.0
  %758 = vmatprep.subr.mxu0 0.0
  %759 = vmatpush1.msra.mxu0 0.0
  %760 = vmatprep.subr.mxu0 0.0
  %761 = vmatpush1.msra.mxu0 0.0
  %762 = vmatprep.subr.mxu0 0.0
  %763 = vmatpush1.msra.mxu0 0.0
  %764 = vmatprep.subr.mxu0 0.0
  %765 = vmatpush1.msra.mxu0 0.0
  %766 = vmatprep.subr.mxu0 0.0
  %767 = vmatpush1.msra.mxu0 0.0
  %768 = vmatprep.subr.mxu0 0.0
  %769 = vmatpush1.msra.mxu0 0.0
  %770 = vmatprep.subr.mxu0 0.0
  %771 = vmatpush1.msra.mxu0 0.0
  %772 = vmatprep.subr.mxu0 0.0
  %773 = vmatpush1.msra.mxu0 0.0
  %774 = vmatprep.subr.mxu0 0.0
  %775 = vmatpush1.msra.mxu0 0.0
  %776 = vmatprep.subr.mxu0 0.0
  %777 = vmatpush1.msra.mxu0 0.0
  %778 = vmatprep.subr.mxu0 0.0
  %779 = vmatpush1.msra.mxu0 0.0
  %780 = vmatprep.subr.mxu0 0.0
  %781 = vmatpush1.msra.mxu0 0.0
  %782 = vmatprep.subr.mxu0 0.0
  %783 = vmatpush1.msra.mxu0 0.0
  %784 = vmatprep.subr.mxu0 0.0
  %785 = vmatpush1.msra.mxu0 0.0
  %786 = vmatprep.mubr.f32.mxu0 0.0
  %787 = vmatmul.mubr.f32.gmra.mrb[0].mxu0 %v720
  %v788 = vpop.f32.mrb[0].mxu0
  %v789 = vadd.f32 %v718, %v788
  %v790 = vpop.f32.mrb[0].mxu0
  %791 = vdwg.mxu0
  %vm792 = vcmask 58368
  %793 = vst.msk [vmem:[%s5] sm:$0x3] %vm792, %v789
  // Predicated region
  $region22: #{forward.1} parent=0 // pred_check
    _
  $region23: #{forward.1} parent=0 // pred_check_branch
    %795 = sbr.rel (0) target = $region25
  $region24: #{forward.1} parent=0 // pred_region
    _
  $region25: #{forward.1} parent=0 // pred_fallthru
    _
  // Predicated region
  $region26: #{forward.1} parent=0 // pred_check
    _
  $region27: #{forward.1} parent=0 // pred_check_branch
    %797 = sbr.rel (0) target = $region29
  $region28: #{forward.1} parent=0 // pred_region
    _
  $region29: #{forward.1} parent=0 // pred_fallthru
    _

</llo_original>
